<compile_context>
chip_gen: v5e
topology: v5e:2x2
jax: 0.10.0
libtpu: 0.0.40
codegen_flags: <defaults>
</compile_context>

<pallas_src>
import functools

import jax
import jax.numpy as jnp
from jax.experimental import pallas as pl
from jax.experimental.pallas import tpu as pltpu

# ---------------- small synthetic config (mirrors LlamaConfig fields) ----------------
VOCAB = 256
HIDDEN = 128
N_HEADS = 4
N_KV_HEADS = 2
HEAD_DIM = HIDDEN // N_HEADS          # 32
INTERMEDIATE = 256
N_LAYERS = 2
EPS = 1e-6
ROPE_THETA = 10000.0
DTYPE = jnp.bfloat16                  # MXU-native dtype; f32 accumulation everywhere

Q_SIZE = N_HEADS * HEAD_DIM           # 128
KV_SIZE = N_KV_HEADS * HEAD_DIM       # 64
QKV_SIZE = Q_SIZE + 2 * KV_SIZE       # 256

NEG_INF = -1e30                       # causal mask constant (kept in f32 math)
VMEM_LIMIT = 48 * 1024 * 1024         # fits v7x's 64 MiB physical VMEM with headroom
MM_TILE_N = 128                       # lane-aligned N/K tiles (divide all toy dims)
MM_TILE_K = 128
ATTN_TILE = 16                        # q/kv row tile (bf16 sublane multiple)


def _cparams(*sems):
    return pltpu.CompilerParams(dimension_semantics=sems,
                                vmem_limit_bytes=VMEM_LIMIT)


def _row_tile(m, max_tile):
    t = min(m, max_tile)
    while m % t:
        t //= 2
    return t


# ------------------------------- Pallas kernels --------------------------------------
def add_rmsnorm_kernel(x_ref, res_ref, w_ref, out_ref, newres_ref, *, eps):
    # fused: residual = x + residual ; out = rmsnorm(residual) * w   (f32 math)
    h = x_ref[...].astype(jnp.float32) + res_ref[...].astype(jnp.float32)
    var = jnp.mean(h * h, axis=-1, keepdims=True)
    inv = jax.lax.rsqrt(var + eps)
    out_ref[...] = (h * inv * w_ref[...].astype(jnp.float32)).astype(out_ref.dtype)
    newres_ref[...] = h.astype(newres_ref.dtype)


def matmul_kernel(x_ref, w_ref, o_ref, acc_ref):
    # tiled y = x @ W_t, f32 accumulator resident across the K grid axis
    @pl.when(pl.program_id(2) == 0)
    def _():
        acc_ref[...] = jnp.zeros_like(acc_ref)

    acc_ref[...] += jnp.dot(x_ref[...], w_ref[...],
                            preferred_element_type=jnp.float32)

    @pl.when(pl.program_id(2) == pl.num_programs(2) - 1)
    def _():
        o_ref[...] = acc_ref[...].astype(o_ref.dtype)


def rope_split_kernel(qkv_ref, cos_ref, sin_ref, q_ref, k_ref, v_ref,
                      *, n_heads, n_kv_heads, head_dim):
    # split qkv (lane-dense [T, Q+2KV]) and apply neox RoPE once per q / kv head
    qkv = qkv_ref[...]
    cos = cos_ref[...]                      # f32 [rows, head_dim//2]
    sin = sin_ref[...]
    half = head_dim // 2
    q_size = n_heads * head_dim
    kv_size = n_kv_heads * head_dim

    def rope_head(xh):
        xf = xh.astype(jnp.float32)
        x1 = xf[:, :half]
        x2 = xf[:, half:]
        return jnp.concatenate([x1 * cos - x2 * sin, x2 * cos + x1 * sin], axis=-1)

    q_parts = [rope_head(qkv[:, h * head_dim:(h + 1) * head_dim])
               for h in range(n_heads)]
    q_ref[...] = jnp.concatenate(q_parts, axis=-1).astype(q_ref.dtype)

    k_parts = [rope_head(qkv[:, q_size + h * head_dim:q_size + (h + 1) * head_dim])
               for h in range(n_kv_heads)]
    k_ref[...] = jnp.concatenate(k_parts, axis=-1).astype(k_ref.dtype)

    v_ref[...] = qkv[:, q_size + kv_size:]


def flash_attn_kernel(q_ref, k_ref, v_ref, o_ref, m_sc, l_sc, acc_sc,
                      *, scale, n_heads, n_kv_heads, head_dim):
    # online-softmax causal attention; all query heads per grid step (lane-dense out)
    qi = pl.program_id(0)
    ki = pl.program_id(1)
    tq = q_ref.shape[0]
    tk = k_ref.shape[0]
    group = n_heads // n_kv_heads

    @pl.when(ki == 0)
    def _():
        m_sc[...] = jnp.full_like(m_sc, NEG_INF)
        l_sc[...] = jnp.zeros_like(l_sc)
        acc_sc[...] = jnp.zeros_like(acc_sc)

    q_start = qi * tq
    k_start = ki * tk

    # skip KV tiles that are entirely above the causal diagonal
    @pl.when(k_start <= q_start + tq - 1)
    def _():
        q = q_ref[...]                     # [tq, n_heads*d] bf16
        k = k_ref[...]                     # [tk, n_kv*d]    bf16
        v = v_ref[...]                     # [tk, n_kv*d]    bf16
        row = q_start + jax.lax.broadcasted_iota(jnp.int32, (tq, tk), 0)
        col = k_start + jax.lax.broadcasted_iota(jnp.int32, (tq, tk), 1)
        causal = col <= row
        for h in range(n_heads):           # static unroll (GQA via kv-head slice)
            kvh = h // group
            qh = q[:, h * head_dim:(h + 1) * head_dim]
            kh = k[:, kvh * head_dim:(kvh + 1) * head_dim]
            vh = v[:, kvh * head_dim:(kvh + 1) * head_dim]
            s = jax.lax.dot_general(
                qh, kh, (((1,), (1,)), ((), ())),
                preferred_element_type=jnp.float32) * scale        # [tq, tk] f32
            s = jnp.where(causal, s, NEG_INF)
            m_prev = m_sc[h]                                       # [tq, 1]
            m_new = jnp.maximum(m_prev, jnp.max(s, axis=-1, keepdims=True))
            alpha = jnp.exp(m_prev - m_new)
            p = jnp.exp(s - m_new)
            l_sc[h] = alpha * l_sc[h] + jnp.sum(p, axis=-1, keepdims=True)
            acc_sc[h] = alpha * acc_sc[h] + jnp.dot(
                p.astype(vh.dtype), vh, preferred_element_type=jnp.float32)
            m_sc[h] = m_new

    @pl.when(ki == pl.num_programs(1) - 1)
    def _():
        outs = [acc_sc[h] * pl.reciprocal(l_sc[h], approx=True)
                for h in range(n_heads)]
        # single lane-dense [tq, n_heads*head_dim] store
        o_ref[...] = jnp.concatenate(outs, axis=-1).astype(o_ref.dtype)


def mlp_kernel(x_ref, wg_ref, wu_ref, wd_ref, o_ref, acc_ref):
    # stream the intermediate dim: per I-tile do gate/up matmuls, SiLU*up in f32,
    # and accumulate the down projection into a resident f32 accumulator.
    j = pl.program_id(1)

    @pl.when(j == 0)
    def _():
        acc_ref[...] = jnp.zeros_like(acc_ref)

    x = x_ref[...]
    gate = jnp.dot(x, wg_ref[...], preferred_element_type=jnp.float32)
    up = jnp.dot(x, wu_ref[...], preferred_element_type=jnp.float32)
    act = gate * jax.nn.sigmoid(gate) * up          # SiLU(gate)*up, f32
    acc_ref[...] += jnp.dot(act.astype(wd_ref.dtype), wd_ref[...],
                            preferred_element_type=jnp.float32)

    @pl.when(j == pl.num_programs(1) - 1)
    def _():
        o_ref[...] = acc_ref[...].astype(o_ref.dtype)


# ------------------------------- kernel wrappers --------------------------------------
def linear(x, w_t):
    m, kdim = x.shape
    kd2, n = w_t.shape
    assert kdim == kd2
    tm = _row_tile(m, 128)
    tn = min(n, MM_TILE_N)
    tk = min(kdim, MM_TILE_K)
    assert n % tn == 0 and kdim % tk == 0
    grid = (m // tm, n // tn, kdim // tk)
    return pl.pallas_call(
        matmul_kernel,
        grid_spec=pltpu.PrefetchScalarGridSpec(
            num_scalar_prefetch=0,
            grid=grid,
            in_specs=[
                pl.BlockSpec((tm, tk), lambda i, j, k: (i, k)),
                pl.BlockSpec((tk, tn), lambda i, j, k: (k, j)),
            ],
            out_specs=pl.BlockSpec((tm, tn), lambda i, j, k: (i, j)),
            scratch_shapes=[pltpu.VMEM((tm, tn), jnp.float32)],
        ),
        out_shape=jax.ShapeDtypeStruct((m, n), DTYPE),
        compiler_params=_cparams("parallel", "parallel", "arbitrary"),
    )(x, w_t)


def add_rmsnorm(x, residual, weight):
    t, h = x.shape
    tm = _row_tile(t, 256)
    return pl.pallas_call(
        functools.partial(add_rmsnorm_kernel, eps=EPS),
        grid_spec=pltpu.PrefetchScalarGridSpec(
            num_scalar_prefetch=0,
            grid=(t // tm,),
            in_specs=[
                pl.BlockSpec((tm, h), lambda i: (i, 0)),
                pl.BlockSpec((tm, h), lambda i: (i, 0)),
                pl.BlockSpec((1, h), lambda i: (0, 0)),
            ],
            out_specs=[
                pl.BlockSpec((tm, h), lambda i: (i, 0)),
                pl.BlockSpec((tm, h), lambda i: (i, 0)),
            ],
        ),
        out_shape=(
            jax.ShapeDtypeStruct((t, h), DTYPE),
            jax.ShapeDtypeStruct((t, h), DTYPE),
        ),
        compiler_params=_cparams("parallel"),
    )(x, residual, weight.reshape(1, h))


def rope_split(qkv, cos, sin):
    t = qkv.shape[0]
    tm = _row_tile(t, 256)
    half = HEAD_DIM // 2
    return pl.pallas_call(
        functools.partial(rope_split_kernel, n_heads=N_HEADS,
                          n_kv_heads=N_KV_HEADS, head_dim=HEAD_DIM),
        grid_spec=pltpu.PrefetchScalarGridSpec(
            num_scalar_prefetch=0,
            grid=(t // tm,),
            in_specs=[
                pl.BlockSpec((tm, QKV_SIZE), lambda i: (i, 0)),
                pl.BlockSpec((tm, half), lambda i: (i, 0)),
                pl.BlockSpec((tm, half), lambda i: (i, 0)),
            ],
            out_specs=[
                pl.BlockSpec((tm, Q_SIZE), lambda i: (i, 0)),
                pl.BlockSpec((tm, KV_SIZE), lambda i: (i, 0)),
                pl.BlockSpec((tm, KV_SIZE), lambda i: (i, 0)),
            ],
        ),
        out_shape=(
            jax.ShapeDtypeStruct((t, Q_SIZE), DTYPE),
            jax.ShapeDtypeStruct((t, KV_SIZE), DTYPE),
            jax.ShapeDtypeStruct((t, KV_SIZE), DTYPE),
        ),
        compiler_params=_cparams("parallel"),
    )(qkv, cos, sin)


def attention(q, k, v):
    t = q.shape[0]
    tq = tk = min(ATTN_TILE, t)
    assert t % tq == 0
    grid = (t // tq, t // tk)          # kv (reduction) axis last
    return pl.pallas_call(
        functools.partial(flash_attn_kernel, scale=HEAD_DIM ** -0.5,
                          n_heads=N_HEADS, n_kv_heads=N_KV_HEADS,
                          head_dim=HEAD_DIM),
        grid_spec=pltpu.PrefetchScalarGridSpec(
            num_scalar_prefetch=0,
            grid=grid,
            in_specs=[
                pl.BlockSpec((tq, Q_SIZE), lambda i, j: (i, 0)),
                pl.BlockSpec((tk, KV_SIZE), lambda i, j: (j, 0)),
                pl.BlockSpec((tk, KV_SIZE), lambda i, j: (j, 0)),
            ],
            out_specs=pl.BlockSpec((tq, Q_SIZE), lambda i, j: (i, 0)),
            scratch_shapes=[
                pltpu.VMEM((N_HEADS, tq, 1), jnp.float32),        # running max
                pltpu.VMEM((N_HEADS, tq, 1), jnp.float32),        # running denom
                pltpu.VMEM((N_HEADS, tq, HEAD_DIM), jnp.float32),  # output acc
            ],
        ),
        out_shape=jax.ShapeDtypeStruct((t, Q_SIZE), DTYPE),
        compiler_params=_cparams("parallel", "arbitrary"),
    )(q, k, v)


def mlp(x, wg_t, wu_t, wd_t):
    t, h = x.shape
    inter = wg_t.shape[1]
    tm = _row_tile(t, 128)
    ti = min(inter, 128)
    assert inter % ti == 0
    grid = (t // tm, inter // ti)      # intermediate (reduction) axis last
    return pl.pallas_call(
        mlp_kernel,
        grid_spec=pltpu.PrefetchScalarGridSpec(
            num_scalar_prefetch=0,
            grid=grid,
            in_specs=[
                pl.BlockSpec((tm, h), lambda i, j: (i, 0)),
                pl.BlockSpec((h, ti), lambda i, j: (0, j)),
                pl.BlockSpec((h, ti), lambda i, j: (0, j)),
                pl.BlockSpec((ti, h), lambda i, j: (j, 0)),
            ],
            out_specs=pl.BlockSpec((tm, h), lambda i, j: (i, 0)),
            scratch_shapes=[pltpu.VMEM((tm, h), jnp.float32)],
        ),
        out_shape=jax.ShapeDtypeStruct((t, h), DTYPE),
        compiler_params=_cparams("parallel", "arbitrary"),
    )(x, wg_t, wu_t, wd_t)


# ------------------------------- params / glue ----------------------------------------
def init_params(key):
    def w(k, shape):
        return (jax.random.normal(k, shape, dtype=jnp.float32) * 0.02).astype(DTYPE)

    params = {"layers": []}
    key, k_emb, k_head = jax.random.split(key, 3)
    params["embed"] = w(k_emb, (VOCAB, HIDDEN))
    params["lm_head_t"] = jnp.transpose(w(k_head, (VOCAB, HIDDEN)))       # [H, V]
    params["final_norm_w"] = jnp.ones((HIDDEN,), DTYPE)
    for _ in range(N_LAYERS):
        key, k1, k2, k3, k4 = jax.random.split(key, 5)
        w_gu = w(k3, (2 * INTERMEDIATE, HIDDEN))                          # fused gate_up
        params["layers"].append({
            "ln1_w": jnp.ones((HIDDEN,), DTYPE),
            "ln2_w": jnp.ones((HIDDEN,), DTYPE),
            "wqkv_t": jnp.transpose(w(k1, (QKV_SIZE, HIDDEN))),           # [H, Q+2KV]
            "wo_t": jnp.transpose(w(k2, (HIDDEN, Q_SIZE))),               # [Q, H]
            "wg_t": jnp.transpose(w_gu[:INTERMEDIATE]),                   # [H, I]
            "wu_t": jnp.transpose(w_gu[INTERMEDIATE:]),                   # [H, I]
            "wd_t": jnp.transpose(w(k4, (HIDDEN, INTERMEDIATE))),         # [I, H]
        })
    return params


def rope_cos_sin(positions):
    # neox RoPE: cos/sin tables for the first half only (both halves share them)
    inv_freq = 1.0 / (
        ROPE_THETA ** (jnp.arange(0, HEAD_DIM, 2, dtype=jnp.float32) / HEAD_DIM)
    )
    freqs = positions.astype(jnp.float32)[:, None] * inv_freq[None, :]    # [T, d/2]
    return jnp.cos(freqs), jnp.sin(freqs)


def llama_forward(params, tokens, positions):
    cos, sin = rope_cos_sin(positions)
    hidden = params["embed"][tokens]                 # embedding gather (glue)
    residual = jnp.zeros_like(hidden)                # first layer: residual := x
    for layer in params["layers"]:
        normed, residual = add_rmsnorm(hidden, residual, layer["ln1_w"])
        qkv = linear(normed, layer["wqkv_t"])                      # [T, Q+2KV]
        q, k, v = rope_split(qkv, cos, sin)                        # lane-dense, RoPE once
        attn_out = attention(q, k, v)                              # [T, Q_SIZE]
        hidden = linear(attn_out, layer["wo_t"])
        normed, residual = add_rmsnorm(hidden, residual, layer["ln2_w"])
        hidden = mlp(normed, layer["wg_t"], layer["wu_t"], layer["wd_t"])
    hidden, _ = add_rmsnorm(hidden, residual, params["final_norm_w"])
    return hidden


def compute_logits(params, hidden, query_start_loc):
    # idx_list = query_start_loc - 1 ; take last token of each query (glue gather)
    idx = query_start_loc[1:] - 1
    last = hidden[idx]
    return linear(last, params["lm_head_t"])         # vocab-tiled, bf16-streamed
# TODO(synk): Sampler / paged KV-cache (InputData block tables) are serving machinery,
#             not reproduced; attention here is full-sequence causal prefill.


# ------------------------------- pure-JAX reference ------------------------------------
def ref_forward(params, tokens, positions):
    # mirrors the kernels' precision policy (bf16 matmul inputs, f32 accumulation,
    # f32 elementwise, bf16 activations between ops)
    t = tokens.shape[0]
    cos, sin = rope_cos_sin(positions)
    cos_f = jnp.concatenate([cos, cos], axis=-1)
    sin_f = jnp.concatenate([sin, sin], axis=-1)

    def mm(a, b):
        return jnp.dot(a, b, preferred_element_type=jnp.float32)

    def rms_add(x, res, wt):
        h = x.astype(jnp.float32) + res.astype(jnp.float32)
        var = jnp.mean(h * h, axis=-1, keepdims=True)
        out = h * jax.lax.rsqrt(var + EPS) * wt.astype(jnp.float32)
        return out.astype(DTYPE), h.astype(DTYPE)

    def rope(x):  # [T, n, D]
        xf = x.astype(jnp.float32)
        x1 = xf[..., :HEAD_DIM // 2]
        x2 = xf[..., HEAD_DIM // 2:]
        rot = jnp.concatenate([-x2, x1], axis=-1)
        return (xf * cos_f[:, None, :] + rot * sin_f[:, None, :]).astype(DTYPE)

    hidden = params["embed"][tokens]
    residual = jnp.zeros_like(hidden)
    group = N_HEADS // N_KV_HEADS
    for layer in params["layers"]:
        normed, residual = rms_add(hidden, residual, layer["ln1_w"])
        qkv = mm(normed, layer["wqkv_t"]).astype(DTYPE)
        q = qkv[:, :Q_SIZE].reshape(t, N_HEADS, HEAD_DIM)
        k = qkv[:, Q_SIZE:Q_SIZE + KV_SIZE].reshape(t, N_KV_HEADS, HEAD_DIM)
        v = qkv[:, Q_SIZE + KV_SIZE:].reshape(t, N_KV_HEADS, HEAD_DIM)
        q, k = rope(q), rope(k)
        k_r = jnp.repeat(k, group, axis=1).astype(jnp.float32)
        v_r = jnp.repeat(v, group, axis=1).astype(jnp.float32)
        s = jnp.einsum("qhd,khd->hqk", q.astype(jnp.float32), k_r) * (HEAD_DIM ** -0.5)
        mask = jnp.tril(jnp.ones((t, t), dtype=bool))
        s = jnp.where(mask[None], s, NEG_INF)
        p = jax.nn.softmax(s, axis=-1)
        o = jnp.einsum("hqk,khd->qhd", p, v_r).reshape(t, Q_SIZE).astype(DTYPE)
        hidden = mm(o, layer["wo_t"]).astype(DTYPE)
        normed, residual = rms_add(hidden, residual, layer["ln2_w"])
        gate = mm(normed, layer["wg_t"])
        up = mm(normed, layer["wu_t"])
        act = (gate * jax.nn.sigmoid(gate) * up).astype(DTYPE)
        hidden = mm(act, layer["wd_t"]).astype(DTYPE)
    normed, _ = rms_add(hidden, residual, params["final_norm_w"])
    return normed


# ---------------------------------------- main ------------------------------------------
if __name__ == "__main__":
    jax.config.update("jax_default_matmul_precision", "highest")

    T = 32                                  # 2x2 attention tile grid exercises tile-skip
    root = jax.random.PRNGKey(0)
    pkey, tkey = jax.random.split(root)
    params = init_params(pkey)
    tokens = jax.random.randint(tkey, (T,), 0, VOCAB, dtype=jnp.int32)
    positions = jnp.arange(T, dtype=jnp.int32)
    query_start_loc = jnp.array([0, T], dtype=jnp.int32)

    hidden = jax.block_until_ready(llama_forward(params, tokens, positions))
    logits = jax.block_until_ready(compute_logits(params, hidden, query_start_loc))

    ref = ref_forward(params, tokens, positions)
    assert hidden.shape == (T, HIDDEN)
    assert logits.shape == (1, VOCAB)
    h32 = hidden.astype(jnp.float32)
    r32 = ref.astype(jnp.float32)
    max_err = float(jnp.max(jnp.abs(h32 - r32)))
    assert jnp.allclose(h32, r32, atol=2e-2, rtol=2e-2), f"max_err={max_err}"
    print("KERNEL_OK")
</pallas_src>

<mosaic_0001>
module attributes {stable_mosaic.version = 11 : i64} {
  func.func @add_rmsnorm_kernel(%arg0: i32, %arg1: memref<32x128xbf16, #tpu.memory_space<vmem>>, %arg2: memref<32x128xbf16, #tpu.memory_space<vmem>>, %arg3: memref<1x128xbf16, #tpu.memory_space<vmem>>, %arg4: memref<32x128xbf16, #tpu.memory_space<vmem>>, %arg5: memref<32x128xbf16, #tpu.memory_space<vmem>>) attributes {dimension_semantics = [#tpu.dimension_semantics<parallel>], iteration_bounds = array<i64: 1>, scalar_prefetch = 0 : i64, scratch_operands = 0 : i64, tpu.core_type = #tpu.core_type<tc>, window_params = [{transform_indices = @transform_0, window_bounds = array<i64: 32, 128>}, {transform_indices = @transform_1, window_bounds = array<i64: 32, 128>}, {pipeline_mode = #tpu.pipeline_mode<synchronous>, transform_indices = @transform_2, window_bounds = array<i64: 1, 128>}, {transform_indices = @transform_3, window_bounds = array<i64: 32, 128>}, {transform_indices = @transform_4, window_bounds = array<i64: 32, 128>}]} {
    %c0 = arith.constant 0 : index
    %c0_0 = arith.constant 0 : index
    %0 = vector.load %arg1[%c0, %c0_0] : memref<32x128xbf16, #tpu.memory_space<vmem>>, vector<32x128xbf16>
    %1 = arith.extf %0 : vector<32x128xbf16> to vector<32x128xf32>
    %c0_1 = arith.constant 0 : index
    %c0_2 = arith.constant 0 : index
    %2 = vector.load %arg2[%c0_1, %c0_2] : memref<32x128xbf16, #tpu.memory_space<vmem>>, vector<32x128xbf16>
    %3 = arith.extf %2 : vector<32x128xbf16> to vector<32x128xf32>
    %4 = arith.addf %1, %3 : vector<32x128xf32>
    %5 = arith.mulf %4, %4 : vector<32x128xf32>
    %cst = arith.constant dense<0.000000e+00> : vector<32xf32>
    %6 = vector.multi_reduction <add>, %5, %cst [1] : vector<32x128xf32> to vector<32xf32>
    %7 = vector.shape_cast %6 : vector<32xf32> to vector<32x1xf32>
    %cst_3 = arith.constant 1.280000e+02 : f32
    %8 = vector.broadcast %cst_3 : f32 to vector<32x1xf32>
    %9 = arith.divf %7, %8 : vector<32x1xf32>
    %cst_4 = arith.constant 9.99999997E-7 : f32
    %10 = vector.broadcast %cst_4 : f32 to vector<32x1xf32>
    %11 = arith.addf %9, %10 : vector<32x1xf32>
    %12 = math.rsqrt %11 : vector<32x1xf32>
    %13 = vector.broadcast %12 : vector<32x1xf32> to vector<32x128xf32>
    %14 = arith.mulf %4, %13 : vector<32x128xf32>
    %c0_5 = arith.constant 0 : index
    %c0_6 = arith.constant 0 : index
    %15 = vector.load %arg3[%c0_5, %c0_6] : memref<1x128xbf16, #tpu.memory_space<vmem>>, vector<1x128xbf16>
    %16 = arith.extf %15 : vector<1x128xbf16> to vector<1x128xf32>
    %17 = vector.broadcast %16 : vector<1x128xf32> to vector<32x128xf32>
    %18 = arith.mulf %14, %17 : vector<32x128xf32>
    %19 = arith.truncf %18 : vector<32x128xf32> to vector<32x128xbf16>
    %c0_7 = arith.constant 0 : index
    %c0_8 = arith.constant 0 : index
    %20 = vector.load %arg4[%c0_7, %c0_8] : memref<32x128xbf16, #tpu.memory_space<vmem>>, vector<32x128xbf16>
    tpu.vector_store %arg4[%c0_7, %c0_8], %19 {strides = array<i32>} : memref<32x128xbf16, #tpu.memory_space<vmem>>, vector<32x128xbf16>,
    %21 = arith.truncf %4 : vector<32x128xf32> to vector<32x128xbf16>
    %c0_9 = arith.constant 0 : index
    %c0_10 = arith.constant 0 : index
    %22 = vector.load %arg5[%c0_9, %c0_10] : memref<32x128xbf16, #tpu.memory_space<vmem>>, vector<32x128xbf16>
    tpu.vector_store %arg5[%c0_9, %c0_10], %21 {strides = array<i32>} : memref<32x128xbf16, #tpu.memory_space<vmem>>, vector<32x128xbf16>,
    return
  }
  func.func @transform_0(%arg0: i32) -> (i32, i32) {
    %c0_i32 = arith.constant 0 : i32
    %c0_i32_0 = arith.constant 0 : i32
    return %arg0, %c0_i32 : i32, i32
  }
  func.func @transform_1(%arg0: i32) -> (i32, i32) {
    %c0_i32 = arith.constant 0 : i32
    %c0_i32_0 = arith.constant 0 : i32
    return %arg0, %c0_i32 : i32, i32
  }
  func.func @transform_2(%arg0: i32) -> (i32, i32) {
    %c0_i32 = arith.constant 0 : i32
    %c0_i32_0 = arith.constant 0 : i32
    %c0_i32_1 = arith.constant 0 : i32
    return %c0_i32, %c0_i32_0 : i32, i32
  }
  func.func @transform_3(%arg0: i32) -> (i32, i32) {
    %c0_i32 = arith.constant 0 : i32
    %c0_i32_0 = arith.constant 0 : i32
    return %arg0, %c0_i32 : i32, i32
  }
  func.func @transform_4(%arg0: i32) -> (i32, i32) {
    %c0_i32 = arith.constant 0 : i32
    %c0_i32_0 = arith.constant 0 : i32
    return %arg0, %c0_i32 : i32, i32
  }
}

</mosaic_0001>

<llo_original>
// kernel: tpu_custom_call.1
$region0: #{tpu_custom_call.1}
  #allocation0 [shape = 'u32[]', space=smem, size = 0x4, offset = 0x4, fixed_abs, tag = 'smem constant byte address 0x4 - core index']
  #allocation1 [shape = 'u32[72,128]{1,0:T(1,128)}', space=vmem, size = 0x9000, scoped, tag = 'internal scratch']
  %s0 = inlined_call_operand.hbm [shape: bf16[32,128], index: 0, kind: input, shape index: {}]
  %s1 = inlined_call_operand.hbm [shape: bf16[32,128], index: 1, kind: input, shape index: {}]
  %s2 = inlined_call_operand.vmem [shape: bf16[1,128], index: 2, kind: input, shape index: {}]
  %s3 = inlined_call_operand.hbm [shape: bf16[32,128], index: 3, kind: output, shape index: {0}]
  %s4 = inlined_call_operand.hbm [shape: bf16[32,128], index: 4, kind: output, shape index: {1}]
  %5 = xla_tuple %s3, %s4
  %s6 = sld [smem:[#allocation0]]
  $region38: #{tpu_custom_call.1} parent=0
    _
  %s8 = ssub.s32 1, %s6
  %s9 = scalar_select 0, %s8, %s6
  $region1: #{tpu_custom_call.1} parent=0
    #allocation2 [shape = 'u8[8192]{0}', space=vmem, size = 0x2000, scoped, tag = 'input window, operand 0, single buffered']
    #allocation3 [shape = 's32[1]{0}', space=sflag, size = 0x4, scoped, tag = 'scoped memory for tpu_custom_call.1']
    #allocation4 [shape = 's32[1]{0}', space=sflag, size = 0x4, scoped, tag = 'scoped memory for tpu_custom_call.1']
    #allocation5 [shape = 'u8[8192]{0}', space=vmem, size = 0x2000, scoped, tag = 'input window, operand 1, single buffered']
    #allocation6 [shape = 's32[1]{0}', space=sflag, size = 0x4, scoped, tag = 'scoped memory for tpu_custom_call.1']
    #allocation7 [shape = 'u8[8192]{0}', space=vmem, size = 0x2000, scoped, tag = 'output window, operand 0, single buffered']
    #allocation8 [shape = 'u8[8192]{0}', space=vmem, size = 0x2000, scoped, tag = 'output window, operand 1, single buffered']
    #allocation9 [shape = 's32[1]{0}', space=sflag, size = 0x4, scoped, tag = 'scoped memory for tpu_custom_call.1']
    %10 = vsyncpa [#allocation3], 0
    %11 = vsyncpa [#allocation6], 0
    %12 = vsyncpa [#allocation4], 0
    %13 = vsyncpa [#allocation9], 0
    // Predicated region
    $region2: #{tpu_custom_call.1} parent=1 // pred_check
      _
    $region3: #{tpu_custom_call.1} parent=1 // pred_check_branch
      %15 = sbr.rel (0) target = $region5
    $region4: #{tpu_custom_call.1} parent=1 // pred_region
      %17 = vsyncadd [#allocation3], 0
      %s18 = sshll.u32 %s0, 4
      %s19 = int_to_ptr.hbm [resolvable:$true] %s18
      %s20 = sshll.u32 [#allocation2], 4
      %s21 = int_to_ptr.vmem [resolvable:$true] %s20
      %26 = dma.hbm_to_vmem [thread:$0]  %s19, 256, %s21, [#allocation3], 64, 64, 4
    $region5: #{tpu_custom_call.1} parent=1 // pred_fallthru
      _
    // Predicated region
    $region6: #{tpu_custom_call.1} parent=1 // pred_check
      _
    $region7: #{tpu_custom_call.1} parent=1 // pred_check_branch
      %28 = sbr.rel (0) target = $region9
    $region8: #{tpu_custom_call.1} parent=1 // pred_region
      %30 = vsyncadd [#allocation6], 0
      %s31 = sshll.u32 %s1, 4
      %s32 = int_to_ptr.hbm [resolvable:$true] %s31
      %s33 = sshll.u32 [#allocation5], 4
      %s34 = int_to_ptr.vmem [resolvable:$true] %s33
      %39 = dma.hbm_to_vmem [thread:$0]  %s32, 256, %s34, [#allocation6], 64, 64, 4
    $region9: #{tpu_custom_call.1} parent=1 // pred_fallthru
      _
    // Predicated region
    $region10: #{tpu_custom_call.1} parent=1 // pred_check
      _
    $region11: #{tpu_custom_call.1} parent=1 // pred_check_branch
      %41 = sbr.rel (0) target = $region13
    $region12: #{tpu_custom_call.1} parent=1 // pred_region
      _
    $region13: #{tpu_custom_call.1} parent=1 // pred_fallthru
      _
    // Predicated region
    $region14: #{tpu_custom_call.1} parent=1 // pred_check
      _
    $region15: #{tpu_custom_call.1} parent=1 // pred_check_branch
      %43 = sbr.rel (0) target = $region17
    $region16: #{tpu_custom_call.1} parent=1 // pred_region
      %45 = dma.done [#allocation3], 256
    $region17: #{tpu_custom_call.1} parent=1 // pred_fallthru
      _
    // Predicated region
    $region18: #{tpu_custom_call.1} parent=1 // pred_check
      _
    $region19: #{tpu_custom_call.1} parent=1 // pred_check_branch
      %47 = sbr.rel (0) target = $region21
    $region20: #{tpu_custom_call.1} parent=1 // pred_region
      %49 = dma.done [#allocation6], 256
    $region21: #{tpu_custom_call.1} parent=1 // pred_fallthru
      _
    %v50 = vld [vmem:[#allocation2] sm:$0xf]
    %v51 = vld [vmem:[#allocation2 + $0x4] sm:$0xf]
    %v52 = vld [vmem:[#allocation2 + $0x8] sm:$0xf]
    %v53 = vld [vmem:[#allocation2 + $0xc] sm:$0xf]
    %v54 = vunpack.c.l.bf16 %v50
    %v55 = vunpack.c.l.bf16 %v51
    %v56 = vunpack.c.l.bf16 %v52
    %v57 = vunpack.c.l.bf16 %v53
    %v58 = vld [vmem:[#allocation5] sm:$0xf]
    %v59 = vld [vmem:[#allocation5 + $0x4] sm:$0xf]
    %v60 = vld [vmem:[#allocation5 + $0x8] sm:$0xf]
    %v61 = vld [vmem:[#allocation5 + $0xc] sm:$0xf]
    %v62 = vunpack.c.l.bf16 %v58
    %v63 = vunpack.c.l.bf16 %v59
    %v64 = vunpack.c.l.bf16 %v60
    %v65 = vunpack.c.l.bf16 %v61
    %v66 = vadd.f32 %v54, %v62
    %v67 = vadd.f32 %v55, %v63
    %v68 = vadd.f32 %v56, %v64
    %v69 = vadd.f32 %v57, %v65
    %v70 = vmul.f32 %v66, %v66
    %v71 = vmul.f32 %v67, %v67
    %v72 = vmul.f32 %v68, %v68
    %v73 = vmul.f32 %v69, %v69
    %74 = vadd.xlane.f32.xlu0 %v70
    %v75 = vpop.xlane.xlu0 %74
    %76 = vadd.xlane.f32.xlu0 %v71
    %v77 = vpop.xlane.xlu0 %76
    %78 = vadd.xlane.f32.xlu0 %v72
    %v79 = vpop.xlane.xlu0 %78
    %80 = vadd.xlane.f32.xlu0 %v73
    %v81 = vpop.xlane.xlu0 %80
    %v82 = vrcp.pop 128.0
    %v83 = vmul.f32 128.0, %v82
    %v84 = vsub.f32 1.0, %v83
    %v85 = vmul.f32 %v82, %v84
    %v86 = vadd.f32 %v82, %v85
    %vm87 = vweird.f32 %v82
    %v88 = vsel %vm87, %v82, %v86
    %v89 = vmul.f32 %v75, %v88
    %v90 = vmul.f32 %v77, %v88
    %v91 = vmul.f32 %v79, %v88
    %v92 = vmul.f32 %v81, %v88
    %v93 = vadd.f32 %v89, 1e-06
    %v94 = vadd.f32 %v90, 1e-06
    %v95 = vadd.f32 %v91, 1e-06
    %v96 = vadd.f32 %v92, 1e-06
    %v97 = vrsqrt.pop %v93
    %v98 = vmul.f32 %v97, %v93
    %v99 = vmul.f32 %v98, %v97
    %v100 = vmul.f32 0.5, %v99
    %v101 = vsub.f32 1.5, %v100
    %v102 = vmul.f32 %v97, %v101
    %vm103 = vweird.f32 %v93
    %vm104 = vweird.f32 %v97
    %vm105 = vmor %vm103, %vm104
    %v106 = vsel %vm105, %v97, %v102
    %v107 = vrsqrt.pop %v94
    %v108 = vmul.f32 %v107, %v94
    %v109 = vmul.f32 %v108, %v107
    %v110 = vmul.f32 0.5, %v109
    %v111 = vsub.f32 1.5, %v110
    %v112 = vmul.f32 %v107, %v111
    %vm113 = vweird.f32 %v94
    %vm114 = vweird.f32 %v107
    %vm115 = vmor %vm113, %vm114
    %v116 = vsel %vm115, %v107, %v112
    %v117 = vrsqrt.pop %v95
    %v118 = vmul.f32 %v117, %v95
    %v119 = vmul.f32 %v118, %v117
    %v120 = vmul.f32 0.5, %v119
    %v121 = vsub.f32 1.5, %v120
    %v122 = vmul.f32 %v117, %v121
    %vm123 = vweird.f32 %v95
    %vm124 = vweird.f32 %v117
    %vm125 = vmor %vm123, %vm124
    %v126 = vsel %vm125, %v117, %v122
    %v127 = vrsqrt.pop %v96
    %v128 = vmul.f32 %v127, %v96
    %v129 = vmul.f32 %v128, %v127
    %v130 = vmul.f32 0.5, %v129
    %v131 = vsub.f32 1.5, %v130
    %v132 = vmul.f32 %v127, %v131
    %vm133 = vweird.f32 %v96
    %vm134 = vweird.f32 %v127
    %vm135 = vmor %vm133, %vm134
    %v136 = vsel %vm135, %v127, %v132
    %v137 = vmul.f32 %v66, %v106
    %v138 = vmul.f32 %v67, %v116
    %v139 = vmul.f32 %v68, %v126
    %v140 = vmul.f32 %v69, %v136
    %v141 = vld [vmem:[%s2] sm:$0x1]
    %v142 = vunpack.c.l.bf16 %v141
    %v143 = vperm.slane %v142, 0
    %v144 = vmul.f32 %v137, %v143
    %v145 = vmul.f32 %v138, %v143
    %v146 = vmul.f32 %v139, %v143
    %v147 = vmul.f32 %v140, %v143
    %v148 = vpack.c.bf16 %v144, %v144
    %v149 = vpack.c.bf16 %v145, %v145
    %v150 = vpack.c.bf16 %v146, %v146
    %v151 = vpack.c.bf16 %v147, %v147
    %152 = vst [vmem:[#allocation7] sm:$0xf] %v148
    %153 = vst [vmem:[#allocation7 + $0x4] sm:$0xf] %v149
    %154 = vst [vmem:[#allocation7 + $0x8] sm:$0xf] %v150
    %155 = vst [vmem:[#allocation7 + $0xc] sm:$0xf] %v151
    %v156 = vpack.c.bf16 %v66, %v66
    %v157 = vpack.c.bf16 %v67, %v67
    %v158 = vpack.c.bf16 %v68, %v68
    %v159 = vpack.c.bf16 %v69, %v69
    %160 = vst [vmem:[#allocation8] sm:$0xf] %v156
    %161 = vst [vmem:[#allocation8 + $0x4] sm:$0xf] %v157
    %162 = vst [vmem:[#allocation8 + $0x8] sm:$0xf] %v158
    %163 = vst [vmem:[#allocation8 + $0xc] sm:$0xf] %v159
    // Predicated region
    $region22: #{tpu_custom_call.1} parent=1 // pred_check
      _
    $region23: #{tpu_custom_call.1} parent=1 // pred_check_branch
      %165 = sbr.rel (0) target = $region25
    $region24: #{tpu_custom_call.1} parent=1 // pred_region
      %167 = vsyncadd [#allocation4], 0
      %s168 = sshll.u32 [#allocation7], 4
      %s169 = int_to_ptr.vmem [resolvable:$true] %s168
      %s170 = sshll.u32 %s3, 4
      %s171 = int_to_ptr.hbm [resolvable:$true] %s170
      %176 = dma.vmem_to_hbm [thread:$0]  %s169, 256, %s171, [#allocation4], 64, 64, 4
    $region25: #{tpu_custom_call.1} parent=1 // pred_fallthru
      _
    // Predicated region
    $region26: #{tpu_custom_call.1} parent=1 // pred_check
      _
    $region27: #{tpu_custom_call.1} parent=1 // pred_check_branch
      %178 = sbr.rel (0) target = $region29
    $region28: #{tpu_custom_call.1} parent=1 // pred_region
      %180 = vsyncadd [#allocation9], 0
      %s181 = sshll.u32 [#allocation8], 4
      %s182 = int_to_ptr.vmem [resolvable:$true] %s181
      %s183 = sshll.u32 %s4, 4
      %s184 = int_to_ptr.hbm [resolvable:$true] %s183
      %189 = dma.vmem_to_hbm [thread:$0]  %s182, 256, %s184, [#allocation9], 64, 64, 4
    $region29: #{tpu_custom_call.1} parent=1 // pred_fallthru
      _
    // Predicated region
    $region30: #{tpu_custom_call.1} parent=1 // pred_check
      _
    $region31: #{tpu_custom_call.1} parent=1 // pred_check_branch
      %191 = sbr.rel (0) target = $region33
    $region32: #{tpu_custom_call.1} parent=1 // pred_region
      %193 = dma.done [#allocation4], 256
    $region33: #{tpu_custom_call.1} parent=1 // pred_fallthru
      _
    // Predicated region
    $region34: #{tpu_custom_call.1} parent=1 // pred_check
      _
    $region35: #{tpu_custom_call.1} parent=1 // pred_check_branch
      %195 = sbr.rel (0) target = $region37
    $region36: #{tpu_custom_call.1} parent=1 // pred_region
      %197 = dma.done [#allocation9], 256
    $region37: #{tpu_custom_call.1} parent=1 // pred_fallthru
      _
    %198 = vsyncpa [#allocation3], 1
    %199 = vsyncpa [#allocation6], 1
    %200 = vsyncpa [#allocation4], 1
    %201 = vsyncpa [#allocation9], 1

</llo_original>
